<compile_context>
chip_gen: v6e
topology: v6e:2x2x1
jax: 0.10.0
libtpu: 0.0.40
codegen_flags: <defaults>
</compile_context>

<pallas_src>
import functools

import jax
import jax.numpy as jnp
from jax.experimental import pallas as pl
from jax.experimental.pallas import tpu as pltpu


def _round_up(x, m):
    return (x + m - 1) // m * m


def _partial_loss_kernel(idx_ref, x_ref, conf_ref, mw_ref, acc_ref, *,
                         span_tile, n_valid_spans, needs_tail_mask,
                         conf_rows_sum_to_one):
    """Grid = (batch, span_tiles).  For one (b, s) tile:
         acc[b] += sum_s' mw[b,s'] * sum_c (log_softmax(x)[b,s',c] * conf[idx[b],s',c])
       acc is a VMEM-resident (1,1,1) output block across the span axis.
    idx_ref (SMEM scalar prefetch) is consumed only by the BlockSpec index_maps.
    """
    s = pl.program_id(1)

    @pl.when(s == 0)
    def _init():
        acc_ref[...] = jnp.zeros_like(acc_ref)

    x = x_ref[...].astype(jnp.float32)                    # (1, TS, C)
    conf = conf_ref[...]
    if conf.shape[1] != x.shape[1]:
        # Single-tile path where the confidence block was rounded up to a
        # multiple of 8 (or to Smax): drop the extra rows.
        conf = conf[:, : x.shape[1], :]
    conf = conf.astype(jnp.float32)                       # (1, TS, C)

    m = jnp.max(x, axis=-1, keepdims=True)                # (1, TS, 1)
    lse = jnp.log(jnp.sum(jnp.exp(x - m), axis=-1, keepdims=True)) + m

    # sum_c (x - lse) * conf  ==  sum_c x*conf  -  lse * sum_c conf
    xc = jnp.sum(x * conf, axis=-1)                       # (1, TS)
    if conf_rows_sum_to_one:
        per_span = xc - lse[..., 0]
    else:
        cs = jnp.sum(conf, axis=-1)                       # (1, TS)
        per_span = xc - lse[..., 0] * cs

    mw = mw_ref[...].astype(jnp.float32)[..., 0]          # (1, TS)  fused mask*weights
    contrib = per_span * mw

    if needs_tail_mask:
        # Kill spans past S coming from the partial boundary block.  Must be a
        # select (not a multiply): the out-of-bounds region of a partial block
        # is unspecified and may hold inf/NaN, and NaN * 0 == NaN.
        ids = s * span_tile + jax.lax.broadcasted_iota(jnp.int32, contrib.shape, 1)
        contrib = jnp.where(ids < n_valid_spans, contrib, 0.0)

    acc_ref[...] += jnp.sum(contrib).reshape(1, 1, 1)


def partial_loss_forward(outputs, index, pad_mask, weights, confidence, *,
                         conf_rows_sum_to_one=False,
                         span_tile_bytes=1 << 20):
    """outputs: [B,S,C], index: [B] int, pad_mask: [B,S] bool, weights: [B,S],
    confidence: [N,Smax,C] with Smax >= S.  Returns a scalar f32 loss.

    outputs / confidence may be f32 or bf16 (the kernel upcasts to f32 for the
    softmax and accumulation); bf16 halves HBM traffic on the two dominant
    streams of this memory-bound kernel.
    """
    B, S, C = outputs.shape
    N, Smax, Cc = confidence.shape
    assert Cc == C and Smax >= S

    # ---- span tiling: blocks in the ~0.5-2 MiB DMA sweet spot --------------
    itemsize = max(jnp.dtype(outputs.dtype).itemsize,
                   jnp.dtype(confidence.dtype).itemsize)
    rows = max(8, (span_tile_bytes // (C * itemsize)) // 8 * 8)
    if rows >= S:
        span_tile, n_span_tiles = S, 1     # full-extent span block (exempt from 8-rule)
    else:
        span_tile, n_span_tiles = rows, -(-S // rows)

    # Confidence block span size must be a multiple of 8 or the full Smax.
    if n_span_tiles == 1 and S % 8 != 0:
        conf_rows = _round_up(S, 8) if _round_up(S, 8) <= Smax else Smax
    else:
        conf_rows = span_tile

    needs_tail_mask = (n_span_tiles * span_tile != S)

    # ---- small side inputs --------------------------------------------------
    # Fused mask*weights; span on the sublane axis, trailing singleton lane dim.
    mw = (pad_mask.astype(jnp.float32) * weights.astype(jnp.float32)).reshape(B, S, 1)
    # Clamp (cheap) so a bad index cannot send the confidence-gather DMA OOB.
    index = jnp.clip(index.astype(jnp.int32), 0, N - 1)

    # ---- specs --------------------------------------------------------------
    deep = {"pipeline_mode": pl.Buffered(3)} if n_span_tiles >= 4 else {}
    x_spec = pl.BlockSpec((1, span_tile, C), lambda b, s, idx: (b, s, 0), **deep)
    conf_spec = pl.BlockSpec((1, conf_rows, C), lambda b, s, idx: (idx[b], s, 0), **deep)
    mw_spec = pl.BlockSpec((1, span_tile, 1), lambda b, s, idx: (b, s, 0))
    out_spec = pl.BlockSpec((1, 1, 1), lambda b, s, idx: (b, 0, 0))   # resident acc

    kernel = functools.partial(
        _partial_loss_kernel,
        span_tile=span_tile,
        n_valid_spans=S,
        needs_tail_mask=needs_tail_mask,
        conf_rows_sum_to_one=conf_rows_sum_to_one,
    )

    partials = pl.pallas_call(
        kernel,
        out_shape=jax.ShapeDtypeStruct((B, 1, 1), jnp.float32),
        grid_spec=pltpu.PrefetchScalarGridSpec(
            num_scalar_prefetch=1,             # `index` lands in SMEM
            grid=(B, n_span_tiles),
            in_specs=[x_spec, conf_spec, mw_spec],
            out_specs=out_spec,
        ),
        compiler_params=pltpu.CompilerParams(
            dimension_semantics=("parallel", "arbitrary"),
        ),
    )(index, outputs, confidence, mw)

    cnt = jnp.sum(pad_mask.astype(jnp.float32))
    # NOTE: cnt == 0 gives NaN, matching PyTorch's .mean() over an empty selection.
    return -(jnp.sum(partials) / cnt)


def _reference_loss(outputs, index, pad_mask, weights, confidence):
    """Plain-JAX reference mirroring the PyTorch code (boolean indexing)."""
    B, S, C = outputs.shape
    logsm = jax.nn.log_softmax(outputs.astype(jnp.float32).reshape(-1, C), axis=-1)
    conf = confidence.astype(jnp.float32)[index, :S, :].reshape(-1, C)
    per = jnp.sum(logsm * conf, axis=-1) * weights.reshape(-1)
    m = pad_mask.reshape(-1).astype(jnp.float32)
    return -(jnp.sum(per * m) / jnp.sum(m))


if __name__ == "__main__":
    key = jax.random.PRNGKey(0)

    def make_inputs(key, B, S, C, N, Smax):
        k1, k2, k3, k4, k5 = jax.random.split(key, 5)
        outputs = jax.random.normal(k1, (B, S, C), dtype=jnp.float32)
        index = jax.random.randint(k2, (B,), 0, N, dtype=jnp.int32)
        pad_mask = jax.random.uniform(k3, (B, S)) > 0.3
        pad_mask = pad_mask.at[0, 0].set(True)            # at least one valid position
        weights = jax.random.uniform(k4, (B, S), dtype=jnp.float32)
        conf = 1.0 + 0.1 * jax.random.uniform(k5, (N, Smax, C), dtype=jnp.float32)
        conf = conf / jnp.sum(conf, axis=-1, keepdims=True)
        return outputs, index, pad_mask, weights, conf

    k0, k1, k2 = jax.random.split(key, 3)

    # 1) Small shapes, single span tile, f32.
    outs, idx, pm, w, conf = make_inputs(k0, B=2, S=8, C=32, N=16, Smax=8)
    loss = jax.block_until_ready(partial_loss_forward(outs, idx, pm, w, conf))
    ref = _reference_loss(outs, idx, pm, w, conf)
    assert jnp.allclose(loss, ref, rtol=2e-5, atol=2e-5), (loss, ref)

    # 1b) S not a multiple of 8, Smax > S, single tile (no padding anywhere).
    outs1, idx1, pm1, w1, conf1 = make_inputs(k1, B=2, S=12, C=32, N=16, Smax=16)
    loss1 = jax.block_until_ready(partial_loss_forward(outs1, idx1, pm1, w1, conf1))
    ref1 = _reference_loss(outs1, idx1, pm1, w1, conf1)
    assert jnp.allclose(loss1, ref1, rtol=2e-5, atol=2e-5), (loss1, ref1)

    # 2) Span-tiled path (S % 8 != 0, Smax > S), f32, deep-buffered pipeline.
    outs2, idx2, pm2, w2, conf2 = make_inputs(k2, B=2, S=300, C=128, N=16, Smax=310)
    loss2 = jax.block_until_ready(
        partial_loss_forward(outs2, idx2, pm2, w2, conf2, span_tile_bytes=16 * 1024))
    ref2 = _reference_loss(outs2, idx2, pm2, w2, conf2)
    assert jnp.allclose(loss2, ref2, rtol=2e-5, atol=2e-5), (loss2, ref2)

    # 3) Same problem with bf16 inputs (halves HBM traffic; f32 accumulation).
    outs_bf = outs2.astype(jnp.bfloat16)
    conf_bf = conf2.astype(jnp.bfloat16)
    loss_bf = jax.block_until_ready(
        partial_loss_forward(outs_bf, idx2, pm2, w2, conf_bf, span_tile_bytes=16 * 1024))
    ref_bf = _reference_loss(outs_bf.astype(jnp.float32), idx2, pm2, w2,
                             conf_bf.astype(jnp.float32))
    assert jnp.allclose(loss_bf, ref_bf, rtol=1e-4, atol=1e-4), (loss_bf, ref_bf)

    print("KERNEL_OK")
</pallas_src>

<mosaic_0001>
module attributes {stable_mosaic.version = 11 : i64} {
  func.func @_partial_loss_kernel(%arg0: i32, %arg1: i32, %arg2: memref<2xi32, #tpu.memory_space<smem>>, %arg3: memref<1x8x32xf32, #tpu.memory_space<vmem>>, %arg4: memref<1x8x32xf32, #tpu.memory_space<vmem>>, %arg5: memref<1x8x1xf32, #tpu.memory_space<vmem>>, %arg6: memref<1x1x1xf32, #tpu.memory_space<vmem>>) attributes {dimension_semantics = [#tpu.dimension_semantics<parallel>, #tpu.dimension_semantics<arbitrary>], iteration_bounds = array<i64: 2, 1>, scalar_prefetch = 1 : i64, scratch_operands = 0 : i64, tpu.core_type = #tpu.core_type<tc>, window_params = [{transform_indices = @transform_0, window_bounds = array<i64: 1, 8, 32>}, {transform_indices = @transform_1, window_bounds = array<i64: 1, 8, 32>}, {transform_indices = @transform_2, window_bounds = array<i64: 1, 8, 1>}, {transform_indices = @transform_3, window_bounds = array<i64: 1, 1, 1>}]} {
    %c0_i32 = arith.constant 0 : i32
    %0 = arith.cmpi eq, %arg1, %c0_i32 : i32
    %1 = arith.extui %0 : i1 to i32
    %c0_i32_0 = arith.constant 0 : i32
    %2 = arith.cmpi ne, %1, %c0_i32_0 : i32
    scf.if %2 {
      %cst_19 = arith.constant 0.000000e+00 : f32
      %31 = vector.broadcast %cst_19 : f32 to vector<1x1x1xf32>
      %c0_20 = arith.constant 0 : index
      %c0_21 = arith.constant 0 : index
      %c0_22 = arith.constant 0 : index
      %32 = vector.load %arg6[%c0_20, %c0_21, %c0_22] : memref<1x1x1xf32, #tpu.memory_space<vmem>>, vector<1x1x1xf32>
      tpu.vector_store %arg6[%c0_20, %c0_21, %c0_22], %31 {strides = array<i32>} : memref<1x1x1xf32, #tpu.memory_space<vmem>>, vector<1x1x1xf32>,
    } else {
    }
    %c0 = arith.constant 0 : index
    %c0_1 = arith.constant 0 : index
    %c0_2 = arith.constant 0 : index
    %3 = vector.load %arg3[%c0, %c0_1, %c0_2] : memref<1x8x32xf32, #tpu.memory_space<vmem>>, vector<1x8x32xf32>
    %c0_3 = arith.constant 0 : index
    %c0_4 = arith.constant 0 : index
    %c0_5 = arith.constant 0 : index
    %4 = vector.load %arg4[%c0_3, %c0_4, %c0_5] : memref<1x8x32xf32, #tpu.memory_space<vmem>>, vector<1x8x32xf32>
    %cst = arith.constant dense<0xFF800000> : vector<1x8xf32>
    %5 = vector.multi_reduction <maximumf>, %3, %cst [2] : vector<1x8x32xf32> to vector<1x8xf32>
    %6 = vector.shape_cast %5 : vector<1x8xf32> to vector<1x8x1xf32>
    %7 = vector.broadcast %6 : vector<1x8x1xf32> to vector<1x8x32xf32>
    %8 = arith.subf %3, %7 : vector<1x8x32xf32>
    %9 = math.exp %8 : vector<1x8x32xf32>
    %cst_6 = arith.constant dense<0.000000e+00> : vector<1x8xf32>
    %10 = vector.multi_reduction <add>, %9, %cst_6 [2] : vector<1x8x32xf32> to vector<1x8xf32>
    %11 = vector.shape_cast %10 : vector<1x8xf32> to vector<1x8x1xf32>
    %12 = math.log %11 : vector<1x8x1xf32>
    %13 = arith.addf %12, %6 : vector<1x8x1xf32>
    %14 = arith.mulf %3, %4 : vector<1x8x32xf32>
    %cst_7 = arith.constant dense<0.000000e+00> : vector<1x8xf32>
    %15 = vector.multi_reduction <add>, %14, %cst_7 [2] : vector<1x8x32xf32> to vector<1x8xf32>
    %cst_8 = arith.constant dense<0.000000e+00> : vector<1x8xf32>
    %16 = vector.multi_reduction <add>, %4, %cst_8 [2] : vector<1x8x32xf32> to vector<1x8xf32>
    %17 = vector.shape_cast %13 : vector<1x8x1xf32> to vector<1x8xf32>
    %18 = arith.mulf %17, %16 : vector<1x8xf32>
    %19 = arith.subf %15, %18 : vector<1x8xf32>
    %c0_9 = arith.constant 0 : index
    %c0_10 = arith.constant 0 : index
    %c0_11 = arith.constant 0 : index
    %20 = vector.load %arg5[%c0_9, %c0_10, %c0_11] : memref<1x8x1xf32, #tpu.memory_space<vmem>>, vector<1x8x1xf32>
    %21 = vector.shape_cast %20 : vector<1x8x1xf32> to vector<1x8xf32>
    %22 = arith.mulf %19, %21 : vector<1x8xf32>
    %c0_12 = arith.constant 0 : index
    %c0_13 = arith.constant 0 : index
    %c0_14 = arith.constant 0 : index
    %23 = vector.load %arg6[%c0_12, %c0_13, %c0_14] : memref<1x1x1xf32, #tpu.memory_space<vmem>>, vector<1x1x1xf32>
    %24 = vector.shape_cast %22 : vector<1x8xf32> to vector<1x1x8xf32>
    %cst_15 = arith.constant dense<0.000000e+00> : vector<1xf32>
    %25 = vector.multi_reduction <add>, %24, %cst_15 [1, 2] : vector<1x1x8xf32> to vector<1xf32>
    %26 = vector.shape_cast %25 : vector<1xf32> to vector<1x1x1xf32>
    %27 = vector.extract %26[0, 0, 0] : f32 from vector<1x1x1xf32>
    %28 = vector.broadcast %27 : f32 to vector<1x1x1xf32>
    %29 = arith.addf %23, %28 : vector<1x1x1xf32>
    %c0_16 = arith.constant 0 : index
    %c0_17 = arith.constant 0 : index
    %c0_18 = arith.constant 0 : index
    %30 = vector.load %arg6[%c0_16, %c0_17, %c0_18] : memref<1x1x1xf32, #tpu.memory_space<vmem>>, vector<1x1x1xf32>
    tpu.vector_store %arg6[%c0_16, %c0_17, %c0_18], %29 {strides = array<i32>} : memref<1x1x1xf32, #tpu.memory_space<vmem>>, vector<1x1x1xf32>,
    return
  }
  func.func @transform_0(%arg0: i32, %arg1: i32, %arg2: memref<2xi32, #tpu.memory_space<smem>>) -> (i32, i32, i32) {
    %c0_i32 = arith.constant 0 : i32
    %c0_i32_0 = arith.constant 0 : i32
    return %arg0, %arg1, %c0_i32 : i32, i32, i32
  }
  func.func @transform_1(%arg0: i32, %arg1: i32, %arg2: memref<2xi32, #tpu.memory_space<smem>>) -> (i32, i32, i32) {
    %0 = arith.index_cast %arg0 : i32 to index
    %1 = memref.load %arg2[%0] : memref<2xi32, #tpu.memory_space<smem>>
    %c0_i32 = arith.constant 0 : i32
    %c0_i32_0 = arith.constant 0 : i32
    return %1, %arg1, %c0_i32 : i32, i32, i32
  }
  func.func @transform_2(%arg0: i32, %arg1: i32, %arg2: memref<2xi32, #tpu.memory_space<smem>>) -> (i32, i32, i32) {
    %c0_i32 = arith.constant 0 : i32
    %c0_i32_0 = arith.constant 0 : i32
    return %arg0, %arg1, %c0_i32 : i32, i32, i32
  }
  func.func @transform_3(%arg0: i32, %arg1: i32, %arg2: memref<2xi32, #tpu.memory_space<smem>>) -> (i32, i32, i32) {
    %c0_i32 = arith.constant 0 : i32
    %c0_i32_0 = arith.constant 0 : i32
    %c0_i32_1 = arith.constant 0 : i32
    return %arg0, %c0_i32, %c0_i32_0 : i32, i32, i32
  }
}

</mosaic_0001>

<llo_original>
// kernel: tpu_custom_call.1
$region0: #{tpu_custom_call.1}
  #allocation0 [shape = 'u32[]', space=smem, size = 0x4, offset = 0x4, fixed_abs, tag = 'smem constant byte address 0x4 - core index']
  #allocation1 [shape = 'u32[144,128]{1,0:T(1,128)}', space=vmem, size = 0x12000, scoped, tag = 'internal scratch']
  #allocation2 [shape = 's32[1]{0}', space=sflag, size = 0x4, scoped, tag = 'scoped memory for tpu_custom_call.1']
  #allocation3 [shape = 'u8[512]{0}', space=smem, size = 0x200, scoped, tag = 'prefetched SMEM operand 0']
  %s0 = inlined_call_operand.vmem [shape: s32[2], index: 0, kind: input, shape index: {}]
  %s1 = inlined_call_operand.vmem [shape: f32[2,8,32], index: 1, kind: input, shape index: {}]
  %s2 = inlined_call_operand.hbm [shape: f32[16,8,32], index: 2, kind: input, shape index: {}]
  %s3 = inlined_call_operand.vmem [shape: f32[2,8,1], index: 3, kind: input, shape index: {}]
  %s4 = inlined_call_operand.vmem [shape: f32[2,1,1], index: 4, kind: output, shape index: {}]
  %s5 = sld [smem:[#allocation0]]
  $region53: #{tpu_custom_call.1} parent=0
    _
  %s7 = ssub.s32 1, %s5
  %s8 = scalar_select 0, %s7, %s5
  %s9 = sshll.u32 %s0, 4
  %s10 = int_to_ptr.vmem [resolvable:$true] %s9
  %12 = dma.vmem_to_smem %s10, 16, [#allocation3], [#allocation2]
  %13 = dma.done [#allocation2], 16
  %14 = sfence
  $region1: #{tpu_custom_call.1} parent=0
    #allocation4 [shape = 'u8[8192]{0}', space=vmem, size = 0x2000, scoped, tag = 'input window, operand 2']
    #allocation5 [shape = 's32[2]{0}', space=sflag, size = 0x8, scoped, tag = 'scoped memory for tpu_custom_call.1']
    %15 = vsyncpa [#allocation5], 0
    %s16 = scalar_lea.sflag [#allocation5], 1
    %17 = vsyncpa %s16, 0
    loop: start=0, step=1, limit=4
    $region2: #{tpu_custom_call.1} parent=1 // loop_pre_header
      _
    $region3: #{tpu_custom_call.1} parent=1 // loop_header
      %s19 = sphi 0, %s23
      %p20 = scmp.ge.s32.totalorder %s19, 4
      %s26 = sphi 0, %s38
      %s27 = sphi 0, %s34
      %s28 = sphi 0, %s26
      %s29 = sphi 0, %s27
      %s30 = sphi 0, %s28
      %s31 = sphi 0, %s29
      %s43 = sphi 0, %s45
      %s46 = sphi 0, %s43
      %s47 = sphi 0, %s46
      %s63 = sphi 0, %s47
      %s73 = sphi 0, %s75
      %s76 = sphi 0, %s73
      %s77 = sphi 0, %s76
      %s93 = sphi 0, %s77
      %s101 = sphi 0, %s103
      %s104 = sphi 0, %s101
      %s105 = sphi 0, %s104
      %s121 = sphi 0, %s105
      %s127 = sphi 0, %s129
      %s130 = sphi 0, %s127
      %s131 = sphi 0, %s130
      %s147 = sphi 0, %s131
    $region4: #{tpu_custom_call.1} parent=1 // loop_header_branch
      %22 = sbr.rel (%p20) target = $region8
    $region5: #{tpu_custom_call.1} parent=1 // loop_body
      %s24 = ssub.s32 %s19, 1
      %s25 = ssub.s32 %s19, 2
      %s32 = sadd.s32 1, %s27
      %p33 = scmp.ge.s32.totalorder %s32, 1
      %s34 = scalar_select %p33, 0, %s32
      %s35 = sadd.s32 1, %s26
      %s36 = scalar_select %p33, %s35, %s26
      %p37 = scmp.ge.s32.totalorder %s36, 2
      %s38 = scalar_select %p37, 0, %s36
      %s39 = ssub.s32 %s26, %s38
      %s40 = ssub.s32 %s27, %s34
      %s41 = sor.u32 %s39, %s40
      %p42 = scmp.eq.s32.totalorder %s41, 0
      %s44 = sadd.s32 %s43, 1
      %s45 = scalar_select %p42, %s43, %s44
      %p48 = pneg %p42
      %p49 = scmp.eq.s32.totalorder %s19, 1
      %p50 = por %p48, %p49
      %p51 = scmp.ne.s32.totalorder %s43, %s46
      %p52 = scmp.eq.s32.totalorder %s19, 0
      %p53 = por %p51, %p52
      %p54 = scmp.ne.s32.totalorder %s43, %s46
      %p55 = scmp.eq.s32.totalorder %s24, 1
      %p56 = por %p54, %p55
      %p57 = scmp.ne.s32.totalorder %s46, %s47
      %p58 = scmp.eq.s32.totalorder %s24, 0
      %p59 = por %p57, %p58
      %p60 = scmp.ne.s32.totalorder %s46, %s47
      %p61 = scmp.eq.s32.totalorder %s25, 1
      %p62 = por %p60, %p61
      %p64 = scmp.ne.s32.totalorder %s47, %s63
      %p65 = scmp.eq.s32.totalorder %s25, 0
      %p66 = por %p64, %p65
      %s67 = sld [smem:[#allocation3 + %s26]]
      %s68 = sld [smem:[#allocation3 + %s38]]
      %s69 = ssub.s32 %s67, %s68
      %s70 = ssub.s32 %s27, %s34
      %s71 = sor.u32 %s69, %s70
      %p72 = scmp.eq.s32.totalorder %s71, 0
      %s74 = sadd.s32 %s73, 1
      %s75 = scalar_select %p72, %s73, %s74
      %p78 = pneg %p72
      %p79 = scmp.eq.s32.totalorder %s19, 1
      %p80 = por %p78, %p79
      %p81 = scmp.ne.s32.totalorder %s73, %s76
      %p82 = scmp.eq.s32.totalorder %s19, 0
      %p83 = por %p81, %p82
      %p84 = scmp.ne.s32.totalorder %s73, %s76
      %p85 = scmp.eq.s32.totalorder %s24, 1
      %p86 = por %p84, %p85
      %p87 = scmp.ne.s32.totalorder %s76, %s77
      %p88 = scmp.eq.s32.totalorder %s24, 0
      %p89 = por %p87, %p88
      %p90 = scmp.ne.s32.totalorder %s76, %s77
      %p91 = scmp.eq.s32.totalorder %s25, 1
      %p92 = por %p90, %p91
      %p94 = scmp.ne.s32.totalorder %s77, %s93
      %p95 = scmp.eq.s32.totalorder %s25, 0
      %p96 = por %p94, %p95
      %s97 = ssub.s32 %s26, %s38
      %s98 = ssub.s32 %s27, %s34
      %s99 = sor.u32 %s97, %s98
      %p100 = scmp.eq.s32.totalorder %s99, 0
      %s102 = sadd.s32 %s101, 1
      %s103 = scalar_select %p100, %s101, %s102
      %p106 = pneg %p100
      %p107 = scmp.eq.s32.totalorder %s19, 1
      %p108 = por %p106, %p107
      %p109 = scmp.ne.s32.totalorder %s101, %s104
      %p110 = scmp.eq.s32.totalorder %s19, 0
      %p111 = por %p109, %p110
      %p112 = scmp.ne.s32.totalorder %s101, %s104
      %p113 = scmp.eq.s32.totalorder %s24, 1
      %p114 = por %p112, %p113
      %p115 = scmp.ne.s32.totalorder %s104, %s105
      %p116 = scmp.eq.s32.totalorder %s24, 0
      %p117 = por %p115, %p116
      %p118 = scmp.ne.s32.totalorder %s104, %s105
      %p119 = scmp.eq.s32.totalorder %s25, 1
      %p120 = por %p118, %p119
      %p122 = scmp.ne.s32.totalorder %s105, %s121
      %p123 = scmp.eq.s32.totalorder %s25, 0
      %p124 = por %p122, %p123
      %s125 = ssub.s32 %s26, %s38
      %p126 = scmp.eq.s32.totalorder %s125, 0
      %s128 = sadd.s32 %s127, 1
      %s129 = scalar_select %p126, %s127, %s128
      %p132 = pneg %p126
      %p133 = scmp.eq.s32.totalorder %s19, 1
      %p134 = por %p132, %p133
      %p135 = scmp.ne.s32.totalorder %s127, %s130
      %p136 = scmp.eq.s32.totalorder %s19, 0
      %p137 = por %p135, %p136
      %p138 = scmp.ne.s32.totalorder %s127, %s130
      %p139 = scmp.eq.s32.totalorder %s24, 1
      %p140 = por %p138, %p139
      %p141 = scmp.ne.s32.totalorder %s130, %s131
      %p142 = scmp.eq.s32.totalorder %s24, 0
      %p143 = por %p141, %p142
      %p144 = scmp.ne.s32.totalorder %s130, %s131
      %p145 = scmp.eq.s32.totalorder %s25, 1
      %p146 = por %p144, %p145
      %p148 = scmp.ne.s32.totalorder %s131, %s147
      %p149 = scmp.eq.s32.totalorder %s25, 0
      %p150 = por %p148, %p149
      %p151 = scmp.le.s32.totalorder 1, %s19
      %p152 = scmp.lt.s32.totalorder %s19, 3
      %p153 = pnand %p151, %p152
      %p154 = pneg %p153
      // Predicated region
      $region9: #{tpu_custom_call.1} parent=5 // pred_check
        _
      $region10: #{tpu_custom_call.1} parent=5 // pred_check_branch
        %156 = sbr.rel (%p153) target = $region12
      $region11: #{tpu_custom_call.1} parent=5 // pred_region
        %s157 = ssub.s32 %s19, 1
      $region12: #{tpu_custom_call.1} parent=5 // pred_fallthru
        _
      %p158 = scmp.lt.s32.totalorder %s19, 2
      // Predicated region
      $region13: #{tpu_custom_call.1} parent=5 // pred_check
        %p159 = pneg %p158
      $region14: #{tpu_custom_call.1} parent=5 // pred_check_branch
        %161 = sbr.rel (%p159) target = $region16
      $region15: #{tpu_custom_call.1} parent=5 // pred_region
        // Predicated region
        $region17: #{tpu_custom_call.1} parent=15 // pred_check
          %p162 = pneg %p53
        $region18: #{tpu_custom_call.1} parent=15 // pred_check_branch
          %164 = sbr.rel (%p162) target = $region20
        $region19: #{tpu_custom_call.1} parent=15 // pred_region
          %p165 = scmp.lt.s32.totalorder %s26, 1
          %s166 = scalar_select %p165, %s26, 1
          %p167 = scmp.lt.s32.totalorder %s27, 0
          %s168 = scalar_select %p167, %s27, 0
          %s169 = sadd.s32 %s168, %s166
          %s170 = smul.addr %s169, 8
          %s171 = scalar_lea.vmem %s1, %s170
        $region20: #{tpu_custom_call.1} parent=15 // pred_fallthru
          _
        // Predicated region
        $region21: #{tpu_custom_call.1} parent=15 // pred_check
          %p172 = pneg %p83
        $region22: #{tpu_custom_call.1} parent=15 // pred_check_branch
          %174 = sbr.rel (%p172) target = $region24
        $region23: #{tpu_custom_call.1} parent=15 // pred_region
          %s175 = sand.u32 %s73, 1
          %s176 = scalar_lea.sflag [#allocation5], %s175
          %s177 = sand.u32 %s73, 1
          %s178 = smul.addr %s177, 8
          %s179 = scalar_lea.vmem [#allocation4], %s178
          %s180 = sld [smem:[#allocation3 + %s26]]
          %s182 = ssub.s32 128, 128
          %183 = vsyncadd %s176, %s182
          %s184 = sadd.s32 %s27, %s180
          %s185 = smul.addr %s184, 128
          %s186 = scalar_lea.hbm %s2, %s185
          %s188 = sshll.u32 %s179, 4
          %s189 = int_to_ptr.vmem [resolvable:$true] %s188
          %191 = dma.hbm_to_vmem [thread:$0]  %s186, 128, %s189, %s176
        $region24: #{tpu_custom_call.1} parent=15 // pred_fallthru
          _
        // Predicated region
        $region25: #{tpu_custom_call.1} parent=15 // pred_check
          %p192 = pneg %p111
        $region26: #{tpu_custom_call.1} parent=15 // pred_check_branch
          %194 = sbr.rel (%p192) target = $region28
        $region27: #{tpu_custom_call.1} parent=15 // pred_region
          %p195 = scmp.lt.s32.totalorder %s26, 1
          %s196 = scalar_select %p195, %s26, 1
          %p197 = scmp.lt.s32.totalorder %s27, 0
          %s198 = scalar_select %p197, %s27, 0
          %s199 = sadd.s32 %s198, %s196
          %s200 = smul.addr %s199, 8
          %s201 = scalar_lea.vmem %s3, %s200
        $region28: #{tpu_custom_call.1} parent=15 // pred_fallthru
          _
      $region16: #{tpu_custom_call.1} parent=5 // pred_fallthru
        _
      %p202 = scmp.le.s32.totalorder 1, %s19
      %p203 = scmp.lt.s32.totalorder %s19, 3
      %p204 = pnand %p202, %p203
      %p205 = pneg %p204
      // Predicated region
      $region29: #{tpu_custom_call.1} parent=5 // pred_check
        _
      $region30: #{tpu_custom_call.1} parent=5 // pred_check_branch
        %207 = sbr.rel (%p204) target = $region32
      $region31: #{tpu_custom_call.1} parent=5 // pred_region
        %s208 = ssub.s32 %s19, 1
        %s209 = sand.u32 %s76, 1
        %s210 = scalar_lea.sflag [#allocation5], %s209
        %s211 = sand.u32 %s76, 1
        %s212 = smul.addr %s211, 8
        %s213 = scalar_lea.vmem [#allocation4], %s212
        // Predicated region
        $region33: #{tpu_custom_call.1} parent=31 // pred_check
          %p214 = pneg %p89
        $region34: #{tpu_custom_call.1} parent=31 // pred_check_branch
          %216 = sbr.rel (%p214) target = $region36
        $region35: #{tpu_custom_call.1} parent=31 // pred_region
          %217 = dma.done %s210, 128
        $region36: #{tpu_custom_call.1} parent=31 // pred_fallthru
          _
        %p218 = scmp.lt.s32.totalorder %s28, 1
        %s219 = scalar_select %p218, %s28, 1
        %p220 = scmp.lt.s32.totalorder %s29, 0
        %s221 = scalar_select %p220, %s29, 0
        %s222 = sadd.s32 %s221, %s219
        %s223 = smul.addr %s222, 8
        %s224 = scalar_lea.vmem %s1, %s223
        %p225 = pneg %p59
        %p226 = pneg %p56
        %s227 = sand.u32 %s76, 1
        %s228 = scalar_lea.sflag [#allocation5], %s227
        %s229 = sand.u32 %s76, 1
        %s230 = smul.addr %s229, 8
        %s231 = scalar_lea.vmem [#allocation4], %s230
        %p232 = pneg %p89
        %p233 = pneg %p86
        %p234 = scmp.lt.s32.totalorder %s28, 1
        %s235 = scalar_select %p234, %s28, 1
        %p236 = scmp.lt.s32.totalorder %s29, 0
        %s237 = scalar_select %p236, %s29, 0
        %s238 = sadd.s32 %s237, %s235
        %s239 = smul.addr %s238, 8
        %s240 = scalar_lea.vmem %s3, %s239
        %p241 = pneg %p117
        %p242 = pneg %p114
        %p243 = pneg %p143
        %p244 = pneg %p140
        %p245 = scmp.lt.s32.totalorder %s28, 1
        %s246 = scalar_select %p245, %s28, 1
        %s247 = scalar_lea.vmem %s4, %s246
        %p248 = scmp.lt.s32.totalorder %s28, 1
        %s249 = scalar_select %p248, %s28, 1
        %p250 = scmp.lt.s32.totalorder %s29, 0
        %s251 = scalar_select %p250, %s29, 0
        %s252 = sadd.s32 %s251, %s249
        %s253 = smul.addr %s252, 8
        %s254 = scalar_lea.vmem %s1, %s253
        %s255 = sld [smem:[#allocation3 + %s28]]
        %p256 = scmp.lt.s32.totalorder %s28, 1
        %s257 = scalar_select %p256, %s28, 1
        %p258 = scmp.lt.s32.totalorder %s29, 0
        %s259 = scalar_select %p258, %s29, 0
        %s260 = sadd.s32 %s259, %s257
        %s261 = smul.addr %s260, 8
        %s262 = scalar_lea.vmem %s3, %s261
        %p263 = scmp.lt.s32.totalorder %s28, 1
        %s264 = scalar_select %p263, %s28, 1
        %s265 = scalar_lea.vmem %s4, %s264
        %p266 = scmp.eq.s32.totalorder %s29, 0
        // Predicated region
        $region37: #{tpu_custom_call.1} parent=31 // pred_check
          %p267 = pneg %p266
        $region38: #{tpu_custom_call.1} parent=31 // pred_check_branch
          %269 = sbr.rel (%p267) target = $region40
        $region39: #{tpu_custom_call.1} parent=31 // pred_region
          %vm270 = vcmask 0
          %271 = vst.msk [vmem:[%s265] sm:$0x1] %vm270, 0.0
        $region40: #{tpu_custom_call.1} parent=31 // pred_fallthru
          _
        %v272 = vld [vmem:[%s254] sm:$0xff]
        %v273 = vld [vmem:[%s213] sm:$0xff]
        %vm274 = vcmask 261120
        %v275 = vsel %vm274, %v272, -inf
        %276 = vmax.xlane.f32.xlu0 %v275
        %v277 = vpop.xlane.xlu0 %276
        %v278 = vsub.f32 %v272, %v277
        %v279 = vmul.f32 %v278, 1.442695
        %v280 = vpow.pop %v279
        %v281 = vsel %vm274, %v280, 0.0
        %282 = vadd.xlane.f32.xlu0 %v281
        %v283 = vpop.xlane.xlu0 %282
        %v284 = vlog2.pop %v283
        %v285 = vmul.f32 %v284, 0.6931472
        %v286 = vadd.f32 %v285, %v277
        %v287 = vmul.f32 %v272, %v273
        %v288 = vsel %vm274, %v287, 0.0
        %289 = vadd.xlane.f32.xlu0 %v288
        %v290 = vpop.xlane.xlu0 %289
        %v291 = vsel %vm274, %v273, 0.0
        %292 = vadd.xlane.f32.xlu0 %v291
        %v293 = vpop.xlane.xlu0 %292
        %v294 = vmul.f32 %v286, %v293
        %v295 = vsub.f32 %v290, %v294
        %v296 = vld [vmem:[%s262] sm:$0xff]
        %v297 = vmul.f32 %v295, %v296
        %v298 = vld [vmem:[%s265] sm:$0x1]
        %300 = vset.pattern.permute.xlu0 0
        %301 = vperm.xlu0 %300, %v297
        %v302 = vpop.permute.xlu0 %301
        %v303 = vlaneseq
        %v304 = vand.u32 %v303, 127
        %v305 = vlaneseq
        %v306 = vshrl.u32 %v305, 7
        %v307 = vsub.s32 %v304, %v306
        %v308 = vrot.slane %v302, %v307
        %vm310 = vcmask 57344
        %v311 = vsel %vm310, %v308, 0.0
        %312 = vadd.xlane.f32.xlu0 %v311
        %v313 = vpop.xlane.xlu0 %312
        %v314 = vrot.slane %v313, 4
        %v315 = vadd.f32 %v313, %v314
        %v316 = vrot.slane %v315, 2
        %v317 = vadd.f32 %v315, %v316
        %v318 = vrot.slane %v317, 1
        %v319 = vadd.f32 %v317, %v318
        %s320 = vtos %v319
        %v321 = vstv %s320
        %v322 = vadd.f32 %v298, %v321
        %vm323 = vcmask 0
        %324 = vst.msk [vmem:[%s265] sm:$0x1] %vm323, %v322
        %p325 = scmp.lt.s32.totalorder %s28, 1
        %s326 = scalar_select %p325, %s28, 1
        %s327 = scalar_lea.vmem %s4, %s326
        // Predicated region
        $region41: #{tpu_custom_call.1} parent=31 // pred_check
          %p328 = pneg %p140
        $region42: #{tpu_custom_call.1} parent=31 // pred_check_branch
          %330 = sbr.rel (%p328) target = $region44
        $region43: #{tpu_custom_call.1} parent=31 // pred_region
          _
        $region44: #{tpu_custom_call.1} parent=31 // pred_fallthru
          _
      $region32: #{tpu_custom_call.1} parent=5 // pred_fallthru
        _
      %p331 = scmp.le.s32.totalorder 2, %s19
      // Predicated region
      $region45: #{tpu_custom_call.1} parent=5 // pred_check
        %p332 = pneg %p331
      $region46: #{tpu_custom_call.1} parent=5 // pred_check_branch
        %334 = sbr.rel (%p332) target = $region48
      $region47: #{tpu_custom_call.1} parent=5 // pred_region
        %s335 = ssub.s32 %s19, 2
        // Predicated region
        $region49: #{tpu_custom_call.1} parent=47 // pred_check
          %p336 = pneg %p146
        $region50: #{tpu_custom_call.1} parent=47 // pred_check_branch
          %338 = sbr.rel (%p336) target = $region52
        $region51: #{tpu_custom_call.1} parent=47 // pred_region
          %p339 = scmp.lt.s32.totalorder %s30, 1
          %s340 = scalar_select %p339, %s30, 1
          %s341 = scalar_lea.vmem %s4, %s340
        $region52: #{tpu_custom_call.1} parent=47 // pred_fallthru
          _
      $region48: #{tpu_custom_call.1} parent=5 // pred_fallthru
        _
    $region6: #{tpu_custom_call.1} parent=1 // loop_footer
      %s23 = sadd.s32 1, %s19
    $region7: #{tpu_custom_call.1} parent=1 // loop_footer_branch
      %18 = sbr.rel target = $region3
    $region8: #{tpu_custom_call.1} parent=1 // loop_exit
      _
    %342 = vsyncpa [#allocation5], 1
    %s343 = scalar_lea.sflag [#allocation5], 1
    %344 = vsyncpa %s343, 1

</llo_original>
